<compile_context>
chip_gen: v5e
topology: v5e:2x2
jax: 0.10.0
libtpu: 0.0.40
codegen_flags: <defaults>
</compile_context>

<pallas_src>
import math
import functools

import jax
import jax.numpy as jnp
from jax.experimental import pallas as pl
from jax.experimental.pallas import tpu as pltpu


_NEG_INF = -1.0e38   # finite floor for the running max (avoids NaN with -inf masks)


@functools.lru_cache(maxsize=None)
def _vmem_limit_bytes():
    """~3/4 of per-core VMEM (capped at 96 MiB); conservative 48 MiB fallback."""
    try:
        info = pltpu.get_tpu_info()
        cap = (getattr(info, "vmem_capacity_bytes", None)
               or getattr(info, "vmem_size_bytes", None))
        if cap:
            return int(min(cap * 3 // 4, 96 * 1024 * 1024))
    except Exception:
        pass
    return 48 * 1024 * 1024


def _pick_tile(dim, candidates):
    """Largest candidate that evenly divides dim, else the full dim (always legal)."""
    for c in candidates:
        if dim >= c and dim % c == 0:
            return c
    return dim


# ---------------------------------------------------------------------------
# Tiled matmul:  y = x @ w   (x: (M, K), w: (K, N)), f32 accumulation in VMEM.
# ---------------------------------------------------------------------------
def _matmul_kernel(x_ref, w_ref, o_ref, acc_ref):
    @pl.when(pl.program_id(2) == 0)
    def _():
        acc_ref[...] = jnp.zeros_like(acc_ref)

    acc_ref[...] += jnp.dot(x_ref[...], w_ref[...],
                            preferred_element_type=jnp.float32)

    @pl.when(pl.program_id(2) == pl.num_programs(2) - 1)
    def _():
        o_ref[...] = acc_ref[...].astype(o_ref.dtype)


def linear(x, w):
    M, K = x.shape
    K2, N = w.shape
    assert K == K2
    tm = _pick_tile(M, (512, 256, 128, 64, 32, 16, 8))
    tn = _pick_tile(N, (512, 256, 128))
    tk = _pick_tile(K, (1024, 512, 256, 128))
    grid = (M // tm, N // tn, K // tk)
    itemsize = x.dtype.itemsize
    cost = pl.CostEstimate(
        flops=2 * M * N * K,
        transcendentals=0,
        # x re-read per N block, w re-read per M block, output written once.
        bytes_accessed=(M * K * (N // tn) + K * N * (M // tm) + M * N) * itemsize,
    )
    return pl.pallas_call(
        _matmul_kernel,
        out_shape=jax.ShapeDtypeStruct((M, N), x.dtype),
        grid=grid,
        in_specs=[
            pl.BlockSpec((tm, tk), lambda i, j, k: (i, k)),
            pl.BlockSpec((tk, tn), lambda i, j, k: (k, j)),
        ],
        out_specs=pl.BlockSpec((tm, tn), lambda i, j, k: (i, j)),
        scratch_shapes=[pltpu.VMEM((tm, tn), jnp.float32)],
        compiler_params=pltpu.CompilerParams(
            dimension_semantics=("parallel", "parallel", "arbitrary"),
            vmem_limit_bytes=_vmem_limit_bytes(),
        ),
        cost_estimate=cost,
    )(x, w)


# ---------------------------------------------------------------------------
# Flash attention kernel.
# grid = (B, num_q_blocks, num_kv_blocks); all heads processed per grid step.
# qkv is consumed directly in its natural (B, S, 3, Hn, D) layout, the output is
# produced in (B, S, Hn, D) layout (no HBM transposes anywhere).
# ---------------------------------------------------------------------------
def _flash_body(q_ref, k_ref, v_ref, mask_ref, o_ref, qs_ref, m_ref, l_ref, acc_ref,
                *, num_heads, scale, mask_per_head):
    ki = pl.program_id(2)

    @pl.when(ki == 0)
    def _init():
        m_ref[...] = jnp.full_like(m_ref, _NEG_INF)
        l_ref[...] = jnp.zeros_like(l_ref)
        acc_ref[...] = jnp.zeros_like(acc_ref)
        # Hoist q * scale (and the per-head slicing) out of the per-KV-step body:
        # the same q block stays resident for all KV steps of this (b, qi).
        q_all = q_ref[0, :, 0, :, :]                      # (tq, Hn, D)
        for h in range(num_heads):
            qs_ref[h] = (q_all[:, h, :] * scale).astype(qs_ref.dtype)

    k_all = k_ref[0, :, 0, :, :]                          # (tkv, Hn, D)
    v_all = v_ref[0, :, 0, :, :]                          # (tkv, Hn, D)
    if mask_ref is not None:
        mask_all = mask_ref[0].astype(jnp.float32)        # single f32 cast, in-kernel

    for h in range(num_heads):
        # QK^T contracted over D; operands stay in the input dtype, f32 accumulation.
        s = jax.lax.dot_general(qs_ref[h], k_all[:, h, :],
                                (((1,), (1,)), ((), ())),
                                preferred_element_type=jnp.float32)    # (tq, tkv)
        if mask_ref is not None:
            s = s + mask_all[h if mask_per_head else 0]   # (mq_blk, tkv) broadcasts

        m_prev = m_ref[h]
        m_new = jnp.maximum(m_prev, jnp.max(s, axis=-1, keepdims=True))
        alpha = jnp.exp(m_prev - m_new)
        p = jnp.exp(s - m_new)
        l_ref[h] = alpha * l_ref[h] + jnp.sum(p, axis=-1, keepdims=True)
        acc_ref[h] = alpha * acc_ref[h] + jnp.dot(
            p.astype(v_all.dtype), v_all[:, h, :], preferred_element_type=jnp.float32)
        m_ref[h] = m_new

    @pl.when(ki == pl.num_programs(2) - 1)
    def _finalize():
        for h in range(num_heads):
            l = l_ref[h]
            l = jnp.where(l == 0.0, 1.0, l)               # fully-masked rows -> 0, not NaN
            inv_l = pl.reciprocal(l, approx=True)
            o_ref[0, :, h, :] = (acc_ref[h] * inv_l).astype(o_ref.dtype)


def _flash_kernel(q_ref, k_ref, v_ref, o_ref, qs_ref, m_ref, l_ref, acc_ref,
                  *, num_heads, scale):
    _flash_body(q_ref, k_ref, v_ref, None, o_ref, qs_ref, m_ref, l_ref, acc_ref,
                num_heads=num_heads, scale=scale, mask_per_head=False)


def _flash_mask_kernel(q_ref, k_ref, v_ref, mask_ref, o_ref, qs_ref, m_ref, l_ref,
                       acc_ref, *, num_heads, scale, mask_per_head):
    _flash_body(q_ref, k_ref, v_ref, mask_ref, o_ref, qs_ref, m_ref, l_ref, acc_ref,
                num_heads=num_heads, scale=scale, mask_per_head=mask_per_head)


def attention(qkv, num_heads, scale, attention_mask=None):
    """qkv: (B, S, 3, Hn, D) as produced by the fused projection. Returns (B, S, Hn, D)."""
    B, S, three, Hn, D = qkv.shape
    assert three == 3 and Hn == num_heads

    tq = _pick_tile(S, (256, 128))             # modest q tile: score-tile vreg pressure
    tkv = _pick_tile(S, (512, 256, 128))
    grid = (B, S // tq, S // tkv)              # KV axis innermost, "arbitrary"

    q_spec = pl.BlockSpec((1, tq, 1, Hn, D), lambda b, qi, ki: (b, qi, 0, 0, 0))
    k_spec = pl.BlockSpec((1, tkv, 1, Hn, D), lambda b, qi, ki: (b, ki, 1, 0, 0))
    v_spec = pl.BlockSpec((1, tkv, 1, Hn, D), lambda b, qi, ki: (b, ki, 2, 0, 0))
    out_spec = pl.BlockSpec((1, tq, Hn, D), lambda b, qi, ki: (b, qi, 0, 0))

    scratch = [
        pltpu.VMEM((Hn, tq, D), qkv.dtype),    # scaled q (filled once per (b, qi))
        pltpu.VMEM((Hn, tq, 1), jnp.float32),  # running max
        pltpu.VMEM((Hn, tq, 1), jnp.float32),  # running denom
        pltpu.VMEM((Hn, tq, D), jnp.float32),  # output accumulator
    ]

    isz = qkv.dtype.itemsize
    nq, nk = S // tq, S // tkv
    flops = 4 * B * Hn * S * S * D             # two matmuls per (q, kv) pair
    transcendentals = B * Hn * S * S           # exp
    bytes_accessed = (B * S * Hn * D * isz               # Q (read once per (b, qi))
                      + 2 * nq * B * S * Hn * D * isz    # K, V re-read per q block
                      + B * S * Hn * D * isz)            # output write

    if attention_mask is None:
        kern = functools.partial(_flash_kernel, num_heads=Hn, scale=scale)
        in_specs = [q_spec, k_spec, v_spec]
        args = (qkv, qkv, qkv)
    else:
        mask = jnp.asarray(attention_mask)
        mask = mask.reshape((1,) * (4 - mask.ndim) + mask.shape)
        mb, mh, mq, mk = mask.shape
        assert mb in (1, B) and mh in (1, Hn) and mq in (1, S) and mk == S
        mq_blk = tq if mq == S else 1
        # Natural extent + natural dtype: broadcast axes pinned to block 0 by the
        # index_map, no HBM broadcast and no wrapper f32 cast.
        mask_spec = pl.BlockSpec(
            (1, mh, mq_blk, tkv),
            lambda b, qi, ki: (b if mb == B else 0, 0, qi if mq == S else 0, ki),
        )
        kern = functools.partial(_flash_mask_kernel, num_heads=Hn, scale=scale,
                                 mask_per_head=(mh == Hn))
        in_specs = [q_spec, k_spec, v_spec, mask_spec]
        args = (qkv, qkv, qkv, mask)
        bytes_accessed += B * nq * nk * mh * mq_blk * tkv * mask.dtype.itemsize

    cost = pl.CostEstimate(flops=flops, transcendentals=transcendentals,
                           bytes_accessed=bytes_accessed)

    return pl.pallas_call(
        kern,
        out_shape=jax.ShapeDtypeStruct((B, S, Hn, D), qkv.dtype),
        grid=grid,
        in_specs=in_specs,
        out_specs=out_spec,
        scratch_shapes=scratch,
        compiler_params=pltpu.CompilerParams(
            dimension_semantics=("parallel", "parallel", "arbitrary"),
            vmem_limit_bytes=_vmem_limit_bytes(),
        ),
        cost_estimate=cost,
    )(*args)


# ---------------------------------------------------------------------------
# Full module forward (matches torch FlashAttention.forward semantics, dropout=0).
# ---------------------------------------------------------------------------
def flash_attention_forward(hidden_states, params, num_heads, attention_mask=None):
    B, S, H = hidden_states.shape
    head_dim = H // num_heads
    assert head_dim * num_heads == H
    scale = 1.0 / math.sqrt(head_dim)

    # torch nn.Linear stores (out, in); transpose the (small) weights once.
    w_qkv = params["qkv_proj"].T               # (H, 3H)
    w_o = params["o_proj"].T                   # (H, H)

    x2 = hidden_states.reshape(B * S, H)
    qkv = linear(x2, w_qkv)                    # (B*S, 3H)  fused projection (Pallas)
    qkv = qkv.reshape(B, S, 3, num_heads, head_dim)   # free reshape, no transpose/split

    out = attention(qkv, num_heads, scale, attention_mask)   # (B, S, Hn, D), flash kernel
    # TODO(synk): dropout > 0 would need pltpu PRNG on the attention probabilities.

    out = linear(out.reshape(B * S, H), w_o)   # (B,S,Hn,D)->(B*S,H) reshape is free
    return out.reshape(B, S, H)


# ---------------------------------------------------------------------------
# Pure-JAX reference for verification.
# ---------------------------------------------------------------------------
def reference_forward(x, params, num_heads, attention_mask=None):
    B, S, H = x.shape
    d = H // num_heads
    qkv = x @ params["qkv_proj"].T
    qkv = jnp.transpose(qkv.reshape(B, S, 3, num_heads, d), (2, 0, 3, 1, 4))
    q, k, v = qkv[0], qkv[1], qkv[2]
    scores = jnp.einsum("bhqd,bhkd->bhqk", q, k) / math.sqrt(d)
    if attention_mask is not None:
        scores = scores + attention_mask
    probs = jax.nn.softmax(scores, axis=-1)
    o = jnp.einsum("bhqk,bhkd->bhqd", probs, v)
    o = jnp.transpose(o, (0, 2, 1, 3)).reshape(B, S, H)
    return o @ params["o_proj"].T


if __name__ == "__main__":
    # Small shapes consistent with the module: batch=2, seq=8, hidden=32, heads=4.
    B, S, H, NUM_HEADS = 2, 8, 32, 4

    key = jax.random.PRNGKey(0)
    k_x, k_qkv, k_o = jax.random.split(key, 3)

    hidden_states = jax.random.normal(k_x, (B, S, H), dtype=jnp.float32)
    params = {
        "qkv_proj": 0.02 * jax.random.normal(k_qkv, (3 * H, H), dtype=jnp.float32),
        "o_proj": 0.02 * jax.random.normal(k_o, (H, H), dtype=jnp.float32),
    }

    # No-mask path.
    out = flash_attention_forward(hidden_states, params, NUM_HEADS, attention_mask=None)
    out = jax.block_until_ready(out)
    ref = reference_forward(hidden_states, params, NUM_HEADS, attention_mask=None)
    assert out.shape == (B, S, H)
    assert jnp.allclose(out, ref, atol=1e-3, rtol=1e-3), "mismatch vs reference (no mask)"

    # Masked path: shared (1,1,S,S) causal additive mask, natural extent/dtype
    # (never broadcast to (B,Hn,S,S) in HBM).
    causal = jnp.where(jnp.tril(jnp.ones((S, S), dtype=bool)), 0.0, -1e9)
    causal = causal.reshape(1, 1, S, S).astype(jnp.float32)
    out_m = flash_attention_forward(hidden_states, params, NUM_HEADS, attention_mask=causal)
    out_m = jax.block_until_ready(out_m)
    ref_m = reference_forward(hidden_states, params, NUM_HEADS, attention_mask=causal)
    assert jnp.allclose(out_m, ref_m, atol=1e-3, rtol=1e-3), "mismatch vs reference (mask)"

    print("KERNEL_OK")
</pallas_src>

<mosaic_0001>
module attributes {stable_mosaic.version = 11 : i64} {
  func.func @_matmul_kernel(%arg0: i32, %arg1: i32, %arg2: i32, %arg3: memref<16x32xf32, #tpu.memory_space<vmem>>, %arg4: memref<32x96xf32, #tpu.memory_space<vmem>>, %arg5: memref<16x96xf32, #tpu.memory_space<vmem>>, %arg6: memref<16x96xf32, #tpu.memory_space<vmem>>) attributes {dimension_semantics = [#tpu.dimension_semantics<parallel>, #tpu.dimension_semantics<parallel>, #tpu.dimension_semantics<arbitrary>], iteration_bounds = array<i64: 1, 1, 1>, scalar_prefetch = 0 : i64, scratch_operands = 1 : i64, tpu.core_type = #tpu.core_type<tc>, window_params = [{transform_indices = @transform_0, window_bounds = array<i64: 16, 32>}, {transform_indices = @transform_1, window_bounds = array<i64: 32, 96>}, {transform_indices = @transform_2, window_bounds = array<i64: 16, 96>}]} {
    %c0_i32 = arith.constant 0 : i32
    %0 = arith.cmpi eq, %arg2, %c0_i32 : i32
    %1 = arith.extui %0 : i1 to i32
    %c0_i32_0 = arith.constant 0 : i32
    %2 = arith.cmpi ne, %1, %c0_i32_0 : i32
    scf.if %2 {
      %cst_10 = arith.constant 0.000000e+00 : f32
      %12 = vector.broadcast %cst_10 : f32 to vector<16x96xf32>
      %c0_11 = arith.constant 0 : index
      %c0_12 = arith.constant 0 : index
      %13 = vector.load %arg6[%c0_11, %c0_12] : memref<16x96xf32, #tpu.memory_space<vmem>>, vector<16x96xf32>
      tpu.vector_store %arg6[%c0_11, %c0_12], %12 {strides = array<i32>} : memref<16x96xf32, #tpu.memory_space<vmem>>, vector<16x96xf32>,
    } else {
    }
    %c0 = arith.constant 0 : index
    %c0_1 = arith.constant 0 : index
    %3 = vector.load %arg6[%c0, %c0_1] : memref<16x96xf32, #tpu.memory_space<vmem>>, vector<16x96xf32>
    %c0_2 = arith.constant 0 : index
    %c0_3 = arith.constant 0 : index
    %4 = vector.load %arg3[%c0_2, %c0_3] : memref<16x32xf32, #tpu.memory_space<vmem>>, vector<16x32xf32>
    %c0_4 = arith.constant 0 : index
    %c0_5 = arith.constant 0 : index
    %5 = vector.load %arg4[%c0_4, %c0_5] : memref<32x96xf32, #tpu.memory_space<vmem>>, vector<32x96xf32>
    %cst = arith.constant dense<0.000000e+00> : vector<16x96xf32>
    %6 = tpu.matmul %4, %5, %cst {dimension_numbers = #tpu.dot_dimension_numbers<[1], [0], [0], [1], [0, 0, 1, 1], [], []>} : vector<16x32xf32>, vector<32x96xf32>, vector<16x96xf32> -> vector<16x96xf32>
    %7 = arith.addf %3, %6 : vector<16x96xf32>
    %c0_6 = arith.constant 0 : index
    %c0_7 = arith.constant 0 : index
    %8 = vector.load %arg6[%c0_6, %c0_7] : memref<16x96xf32, #tpu.memory_space<vmem>>, vector<16x96xf32>
    tpu.vector_store %arg6[%c0_6, %c0_7], %7 {strides = array<i32>} : memref<16x96xf32, #tpu.memory_space<vmem>>, vector<16x96xf32>,
    %c0_i32_8 = arith.constant 0 : i32
    %9 = arith.cmpi eq, %arg2, %c0_i32_8 : i32
    %10 = arith.extui %9 : i1 to i32
    %c0_i32_9 = arith.constant 0 : i32
    %11 = arith.cmpi ne, %10, %c0_i32_9 : i32
    scf.if %11 {
      %c0_10 = arith.constant 0 : index
      %c0_11 = arith.constant 0 : index
      %12 = vector.load %arg6[%c0_10, %c0_11] : memref<16x96xf32, #tpu.memory_space<vmem>>, vector<16x96xf32>
      %c0_12 = arith.constant 0 : index
      %c0_13 = arith.constant 0 : index
      %13 = vector.load %arg5[%c0_12, %c0_13] : memref<16x96xf32, #tpu.memory_space<vmem>>, vector<16x96xf32>
      tpu.vector_store %arg5[%c0_12, %c0_13], %12 {strides = array<i32>} : memref<16x96xf32, #tpu.memory_space<vmem>>, vector<16x96xf32>,
    } else {
    }
    return
  }
  func.func @transform_0(%arg0: i32, %arg1: i32, %arg2: i32) -> (i32, i32) {
    %c0_i32 = arith.constant 0 : i32
    return %arg0, %arg2 : i32, i32
  }
  func.func @transform_1(%arg0: i32, %arg1: i32, %arg2: i32) -> (i32, i32) {
    %c0_i32 = arith.constant 0 : i32
    return %arg2, %arg1 : i32, i32
  }
  func.func @transform_2(%arg0: i32, %arg1: i32, %arg2: i32) -> (i32, i32) {
    %c0_i32 = arith.constant 0 : i32
    return %arg0, %arg1 : i32, i32
  }
}

</mosaic_0001>

<llo_original>
// kernel: tpu_custom_call.1
$region0: #{tpu_custom_call.1}
  #allocation0 [shape = 'u32[]', space=smem, size = 0x4, offset = 0x4, fixed_abs, tag = 'smem constant byte address 0x4 - core index']
  #allocation1 [shape = 'u32[72,128]{1,0:T(1,128)}', space=vmem, size = 0x9000, scoped, tag = 'internal scratch']
  #allocation2 [shape = 'f32[16,96]{1,0:T(8,128)}', space=vmem, size = 0x2000, scoped, tag = 'scratch operand']
  %s0 = inlined_call_operand.hbm [shape: f32[16,32], index: 0, kind: input, shape index: {}]
  %s1 = inlined_call_operand.hbm [shape: f32[32,96], index: 1, kind: input, shape index: {}]
  %s2 = inlined_call_operand.hbm [shape: f32[16,96], index: 2, kind: output, shape index: {}]
  %s3 = sld [smem:[#allocation0]]
  $region34: #{tpu_custom_call.1} parent=0
    _
  %s5 = ssub.s32 1, %s3
  %s6 = scalar_select 0, %s5, %s3
  $region1: #{tpu_custom_call.1} parent=0
    #allocation3 [shape = 'u8[8192]{0}', space=vmem, size = 0x2000, scoped, tag = 'input window, operand 0, single buffered']
    #allocation4 [shape = 's32[1]{0}', space=sflag, size = 0x4, scoped, tag = 'scoped memory for tpu_custom_call.1']
    #allocation5 [shape = 's32[1]{0}', space=sflag, size = 0x4, scoped, tag = 'scoped memory for tpu_custom_call.1']
    #allocation6 [shape = 'u8[16384]{0}', space=vmem, size = 0x4000, scoped, tag = 'input window, operand 1, single buffered']
    #allocation7 [shape = 's32[1]{0}', space=sflag, size = 0x4, scoped, tag = 'scoped memory for tpu_custom_call.1']
    #allocation8 [shape = 'u8[8192]{0}', space=vmem, size = 0x2000, scoped, tag = 'output window, operand 0, single buffered']
    %7 = vsyncpa [#allocation4], 0
    %8 = vsyncpa [#allocation7], 0
    %9 = vsyncpa [#allocation5], 0
    // Predicated region
    $region2: #{tpu_custom_call.1} parent=1 // pred_check
      _
    $region3: #{tpu_custom_call.1} parent=1 // pred_check_branch
      %11 = sbr.rel (0) target = $region5
    $region4: #{tpu_custom_call.1} parent=1 // pred_region
      %13 = vsyncadd [#allocation4], 0
      %s14 = sshll.u32 %s0, 4
      %s15 = int_to_ptr.hbm [resolvable:$true] %s14
      %s16 = sshll.u32 [#allocation3], 4
      %s17 = int_to_ptr.vmem [resolvable:$true] %s16
      %22 = dma.hbm_to_vmem [thread:$0]  %s15, 256, %s17, [#allocation4], 128, 128, 8
    $region5: #{tpu_custom_call.1} parent=1 // pred_fallthru
      _
    // Predicated region
    $region6: #{tpu_custom_call.1} parent=1 // pred_check
      _
    $region7: #{tpu_custom_call.1} parent=1 // pred_check_branch
      %24 = sbr.rel (0) target = $region9
    $region8: #{tpu_custom_call.1} parent=1 // pred_region
      %26 = vsyncadd [#allocation7], 0
      %s27 = sshll.u32 %s1, 4
      %s28 = int_to_ptr.hbm [resolvable:$true] %s27
      %s29 = sshll.u32 [#allocation6], 4
      %s30 = int_to_ptr.vmem [resolvable:$true] %s29
      %35 = dma.hbm_to_vmem [thread:$0]  %s28, 512, %s30, [#allocation7], 128, 128, 8
    $region9: #{tpu_custom_call.1} parent=1 // pred_fallthru
      _
    // Predicated region
    $region10: #{tpu_custom_call.1} parent=1 // pred_check
      _
    $region11: #{tpu_custom_call.1} parent=1 // pred_check_branch
      %37 = sbr.rel (0) target = $region13
    $region12: #{tpu_custom_call.1} parent=1 // pred_region
      %39 = dma.done [#allocation4], 256
    $region13: #{tpu_custom_call.1} parent=1 // pred_fallthru
      _
    // Predicated region
    $region14: #{tpu_custom_call.1} parent=1 // pred_check
      _
    $region15: #{tpu_custom_call.1} parent=1 // pred_check_branch
      %41 = sbr.rel (0) target = $region17
    $region16: #{tpu_custom_call.1} parent=1 // pred_region
      %43 = dma.done [#allocation7], 512
    $region17: #{tpu_custom_call.1} parent=1 // pred_fallthru
      _
    %p44 = scmp.eq.s32.totalorder 0, 0
    // Predicated region
    $region18: #{tpu_custom_call.1} parent=1 // pred_check
      %p45 = pneg %p44
    $region19: #{tpu_custom_call.1} parent=1 // pred_check_branch
      %47 = sbr.rel (%p45) target = $region21
    $region20: #{tpu_custom_call.1} parent=1 // pred_region
      %vm48 = vcmask 785408
      %49 = vst.msk [vmem:[#allocation2] sm:$0xff] %vm48, 0.0
      %50 = vst.msk [vmem:[#allocation2 + $0x8] sm:$0xff] %vm48, 0.0
    $region21: #{tpu_custom_call.1} parent=1 // pred_fallthru
      _
    %v51 = vld [vmem:[#allocation2] sm:$0xff]
    %v52 = vld [vmem:[#allocation2 + $0x8] sm:$0xff]
    %v53 = vld [vmem:[#allocation3] sm:$0xff]
    %v54 = vld [vmem:[#allocation3 + $0x8] sm:$0xff]
    %v55 = vld [vmem:[#allocation6] sm:$0xff]
    %v56 = vld [vmem:[#allocation6 + $0x8] sm:$0xff]
    %v57 = vld [vmem:[#allocation6 + $0x10] sm:$0xff]
    %v58 = vld [vmem:[#allocation6 + $0x18] sm:$0xff]
    %vm59 = vcmask 261120
    %v61 = vsel %vm59, %v53, 0
    %v64 = vsel %vm59, %v54, 0
    %66 = vmatpush.msra.mxu0 0.0
    %67 = vmatpush.msra.mxu0 0.0
    %68 = vmatpush.msra.mxu0 0.0
    %69 = vmatpush.msra.mxu0 0.0
    %70 = vmatpush.msra.mxu0 0.0
    %71 = vmatpush.msra.mxu0 0.0
    %72 = vmatpush.msra.mxu0 0.0
    %73 = vmatpush.msra.mxu0 0.0
    %74 = vmatpush.msra.mxu0 0.0
    %75 = vmatpush.msra.mxu0 0.0
    %76 = vmatpush.msra.mxu0 0.0
    %77 = vmatpush.msra.mxu0 0.0
    %78 = vmatpush.msra.mxu0 %v58
    %79 = vmatpush.msra.mxu0 %v57
    %80 = vmatpush.msra.mxu0 %v56
    %81 = vmatpush.msra.mxu0 %v55
    %82 = vmatmul.f32.gmra.mxu0 %v61
    %v83 = vpop.f32.mrf.mxu0
    %v84 = vadd.f32 0.0, %v83
    %85 = vmatmul.f32.gmra.mxu0 %v64
    %v86 = vpop.f32.mrf.mxu0
    %v87 = vadd.f32 0.0, %v86
    %88 = vdwg.mxu0
    %v89 = vadd.f32 %v51, %v84
    %v90 = vadd.f32 %v52, %v87
    %vm91 = vcmask 785408
    %92 = vst.msk [vmem:[#allocation2] sm:$0xff] %vm91, %v89
    %93 = vst.msk [vmem:[#allocation2 + $0x8] sm:$0xff] %vm91, %v90
    // Predicated region
    $region22: #{tpu_custom_call.1} parent=1 // pred_check
      %p94 = pneg %p44
    $region23: #{tpu_custom_call.1} parent=1 // pred_check_branch
      %96 = sbr.rel (%p94) target = $region25
    $region24: #{tpu_custom_call.1} parent=1 // pred_region
      %v97 = vld [vmem:[#allocation2] sm:$0xff]
      %v98 = vld [vmem:[#allocation2 + $0x8] sm:$0xff]
      %99 = vst.msk [vmem:[#allocation8] sm:$0xff] %vm91, %v97
      %100 = vst.msk [vmem:[#allocation8 + $0x8] sm:$0xff] %vm91, %v98
    $region25: #{tpu_custom_call.1} parent=1 // pred_fallthru
      _
    // Predicated region
    $region26: #{tpu_custom_call.1} parent=1 // pred_check
      _
    $region27: #{tpu_custom_call.1} parent=1 // pred_check_branch
      %102 = sbr.rel (0) target = $region29
    $region28: #{tpu_custom_call.1} parent=1 // pred_region
      %104 = vsyncadd [#allocation5], 0
      %s105 = sshll.u32 [#allocation8], 4
      %s106 = int_to_ptr.vmem [resolvable:$true] %s105
      %s107 = sshll.u32 %s2, 4
      %s108 = int_to_ptr.hbm [resolvable:$true] %s107
      %113 = dma.vmem_to_hbm [thread:$0]  %s106, 256, %s108, [#allocation5], 128, 128, 8
    $region29: #{tpu_custom_call.1} parent=1 // pred_fallthru
      _
    // Predicated region
    $region30: #{tpu_custom_call.1} parent=1 // pred_check
      _
    $region31: #{tpu_custom_call.1} parent=1 // pred_check_branch
      %115 = sbr.rel (0) target = $region33
    $region32: #{tpu_custom_call.1} parent=1 // pred_region
      %117 = dma.done [#allocation5], 256
    $region33: #{tpu_custom_call.1} parent=1 // pred_fallthru
      _
    %118 = vsyncpa [#allocation4], 1
    %119 = vsyncpa [#allocation7], 1
    %120 = vsyncpa [#allocation5], 1

</llo_original>
